<compile_context>
chip_gen: v7x
topology: tpu7x:2x2x1
jax: 0.10.0
libtpu: 0.0.40
codegen_flags: <defaults>
</compile_context>

<pallas_src>
import functools

import jax
import jax.numpy as jnp
import numpy as np
from jax import lax
from jax.experimental import pallas as pl
from jax.experimental.pallas import tpu as pltpu


def _gelu_tanh(x):
    # TODO(synk): activation assumed to be tanh-approx GELU (see header note).
    c = 0.7978845608028654  # sqrt(2/pi)
    return 0.5 * x * (1.0 + jnp.tanh(c * (x + 0.044715 * x * x * x)))


def _upsample_kernel(x_ref, w_ref, b_ref, o_ref, *, n_stk_pnt):
    """One (batch, output-point-tile) block; writes the interleaved output.

    x_ref : [cin, L]        lane-repeated input, x_rep[:, l] = x[:, l // 2]
    w_ref : [4, cout, cin]  ConvTranspose taps with the BN scale folded in
    b_ref : [cout, 1]       folded conv bias + BN shift
    o_ref : [cout, L]       output lane l = output point 2*t + parity (final layout)
    """
    cin, L = x_ref.shape
    x = x_ref[...]
    f32 = jnp.float32

    # Per-lane bookkeeping.  Tiles are stroke aligned (L % (2*n_stk_pnt) == 0),
    # so the within-stroke position depends only on the local lane index; no
    # program_id and no HBM mask stream needed.
    lane = lax.broadcasted_iota(jnp.int32, (1, L), 1)
    parity = lane & 1                              # even / odd output point
    q = (lane >> 1) % n_stk_pnt                    # position of x[t] inside its stroke
    m_cur_e = (parity == 0).astype(x.dtype)                            # tap W1
    m_cur_o = (parity == 1).astype(x.dtype)                            # tap W2
    m_prev = ((parity == 0) & (q != 0)).astype(x.dtype)                # tap W3, x[t-1]
    m_next = ((parity == 1) & (q != n_stk_pnt - 1)).astype(x.dtype)    # tap W0, x[t+1]

    # In-register lane shift: out[:, l] = v[:, l + off].  Wrap-around lanes are
    # exactly stroke-boundary lanes, which the masks above zero out.  The rotate
    # convention is probed at run time with a tiny iota roll so the kernel is
    # correct regardless of the hardware rotate direction; the XLU has idle
    # slots here, so the extra rolls are free.
    probe = lax.broadcasted_iota(jnp.int32, (1, 128), 1)
    fwd = pltpu.roll(probe, 1, 1)[:, 1:2] == 0     # [1,1]: matches jnp.roll convention?

    def shift(v, off):
        a = pltpu.roll(v, (-off) % L, 1)           # correct under jnp.roll convention
        b = pltpu.roll(v, off % L, 1)              # correct under the flipped convention
        return jnp.where(fwd, a, b)

    x_prev = shift(x, -2)                          # x[t-1]  (consumed on even lanes)
    x_next = shift(x, 2)                           # x[t+1]  (consumed on odd lanes)

    # Four accumulating MXU pushes (no zero-padded packed weight, no concat temp).
    acc = jnp.dot(w_ref[1], x * m_cur_e, preferred_element_type=f32)
    acc = acc + jnp.dot(w_ref[2], x * m_cur_o, preferred_element_type=f32)
    acc = acc + jnp.dot(w_ref[3], x_prev * m_prev, preferred_element_type=f32)
    acc = acc + jnp.dot(w_ref[0], x_next * m_next, preferred_element_type=f32)

    y = acc + b_ref[...]                           # [cout, L], f32
    o_ref[...] = _gelu_tanh(y).astype(o_ref.dtype)


def _vmem_capacity_bytes():
    """Per-core VMEM capacity; conservative (v7x) fallback if unqueryable."""
    try:
        cap = getattr(pltpu.get_tpu_info(), "vmem_capacity_bytes", None)
        if cap:
            return int(cap)
    except Exception:
        pass
    return 64 * 1024 * 1024


def _pick_out_tile(n_out, stroke_out, bs, cin, cout, itemsize, vmem_cap):
    """Largest stroke-aligned, lane-dense output tile that fits the VMEM budget."""

    def need(L):
        # 2x-buffered x / out blocks + live shift/mask temps (~4x [cin,L]) +
        # accumulator temps (~2x [cout,L]) + both weight/bias buffers.
        return (itemsize * L * (2 * cin + 2 * cout + 4 * cin + 2 * cout)
                + 2 * itemsize * (4 * cout * cin + cout) + (1 << 14))

    budget = int(0.35 * vmem_cap)
    n_units = n_out // stroke_out
    cands = [stroke_out * d for d in range(1, n_units + 1) if n_units % d == 0]
    # Lane-dense blocks only: multiple of 128, or the full extent (always legal).
    legal = [L for L in cands if L % 128 == 0 or L == n_out]
    pool = [L for L in legal if need(L) <= budget] or [min(legal)]
    L = max(pool)
    # v7x has 2 TensorCores: keep at least 2 parallel grid steps when possible.
    if bs * (n_out // L) < 2:
        smaller = [c for c in pool if n_out // c >= 2]
        if smaller:
            L = max(smaller)
    return L, need(L)


def upsample_forward(x, params, *, n_stk, n_stk_pnt):
    """x: [bs, emb, n_pnt] (float32).  Returns [bs, dim_out, 2 * n_pnt]."""
    W, b_conv, gamma, beta, run_mean, run_var, eps = (
        params["W"], params["b_conv"], params["gamma"], params["beta"],
        params["run_mean"], params["run_var"], params["eps"])

    bs, cin, n_pnt = x.shape
    assert n_pnt == n_stk * n_stk_pnt
    cout = W.shape[1]
    n_out = 2 * n_pnt

    # ---- fold eval-mode BatchNorm + conv bias into the taps / one bias -------
    inv_std = 1.0 / jnp.sqrt(run_var + eps)
    scale = gamma * inv_std                                  # [cout]
    bias = beta + (b_conv - run_mean) * scale                # [cout]

    w = jnp.transpose(W[:, :, 0, :], (2, 1, 0))              # [4, cout, cin]
    w = (w * scale[None, :, None]).astype(x.dtype)           # BN scale folded in
    b = bias[:, None].astype(jnp.float32)                    # [cout, 1]

    # ---- lane-repeated input (the cheap, input-sized half of the interleave) --
    # x_rep[:, :, l] = x[:, :, l // 2]; the kernel then emits the final
    # interleaved output directly, so no epilogue transpose touches the 4x-sized
    # output stream.
    x_rep = jnp.repeat(x, 2, axis=2)                         # [bs, cin, 2*n_pnt]

    # ---- VMEM-budget-aware tile choice + explicit scoped-VMEM limit ----------
    itemsize = x.dtype.itemsize
    vmem_cap = _vmem_capacity_bytes()
    L, need_bytes = _pick_out_tile(n_out, 2 * n_stk_pnt, bs, cin, cout,
                                   itemsize, vmem_cap)
    assert n_out % L == 0 and L % (2 * n_stk_pnt) == 0
    grid = (bs, n_out // L)
    vmem_limit = int(min(0.9 * vmem_cap, max(3 * need_bytes, 32 * 1024 * 1024)))

    kernel = functools.partial(_upsample_kernel, n_stk_pnt=n_stk_pnt)

    out = pl.pallas_call(
        kernel,
        out_shape=jax.ShapeDtypeStruct((bs, cout, n_out), x.dtype),
        grid=grid,
        in_specs=[
            pl.BlockSpec((None, cin, L), lambda bi, ti: (bi, 0, ti)),   # x_rep
            pl.BlockSpec((4, cout, cin), lambda bi, ti: (0, 0, 0)),     # taps
            pl.BlockSpec((cout, 1), lambda bi, ti: (0, 0)),             # bias
        ],
        out_specs=pl.BlockSpec((None, cout, L), lambda bi, ti: (bi, 0, ti)),
        compiler_params=pltpu.CompilerParams(
            dimension_semantics=("parallel", "parallel"),
            vmem_limit_bytes=vmem_limit),
        cost_estimate=pl.CostEstimate(
            flops=8 * bs * cout * cin * n_out,
            transcendentals=bs * cout * n_out,
            bytes_accessed=itemsize * bs * n_out * (cin + cout)
                           + itemsize * (4 * cout * cin + cout)),
    )(x_rep, w, b)
    return out


def upsample_reference(x, params, *, n_stk, n_stk_pnt):
    """Pure-JAX reference: ConvTranspose2d via lhs-dilated conv + BN + GELU."""
    W, b_conv, gamma, beta, rm, rv, eps = (
        params["W"], params["b_conv"], params["gamma"], params["beta"],
        params["run_mean"], params["run_var"], params["eps"])
    bs, cin, n_pnt = x.shape
    x4 = x.reshape(bs, cin, n_stk, n_stk_pnt)
    # ConvTranspose(k=4,s=2,p=1)  ==  conv(flip(W^T), lhs_dilation=2, pad=k-1-p=2)
    w_conv = jnp.flip(jnp.transpose(W, (1, 0, 2, 3)), axis=3)   # [Cout, Cin, 1, 4]
    y = jax.lax.conv_general_dilated(
        x4, w_conv, window_strides=(1, 1),
        padding=((0, 0), (2, 2)), lhs_dilation=(1, 2), rhs_dilation=(1, 1),
        dimension_numbers=("NCHW", "OIHW", "NCHW"))
    y = y + b_conv[None, :, None, None]
    y = ((y - rm[None, :, None, None]) / jnp.sqrt(rv + eps)[None, :, None, None]
         * gamma[None, :, None, None] + beta[None, :, None, None])
    y = _gelu_tanh(y)
    return y.reshape(bs, y.shape[1], n_stk * n_stk_pnt * 2)


if __name__ == "__main__":
    bs, dim_in, dim_out = 2, 8, 16
    n_stk, n_stk_pnt = 4, 32
    n_pnt = n_stk * n_stk_pnt

    key = jax.random.PRNGKey(0)
    k_x, k_w, k_b, k_g, k_be, k_rm, k_rv = jax.random.split(key, 7)

    x = jax.random.normal(k_x, (bs, dim_in, n_pnt), dtype=jnp.float32)

    params = {
        "W": 0.1 * jax.random.normal(k_w, (dim_in, dim_out, 1, 4), dtype=jnp.float32),
        "b_conv": 0.1 * jax.random.normal(k_b, (dim_out,), dtype=jnp.float32),
        "gamma": 1.0 + 0.1 * jax.random.normal(k_g, (dim_out,), dtype=jnp.float32),
        "beta": 0.1 * jax.random.normal(k_be, (dim_out,), dtype=jnp.float32),
        "run_mean": 0.1 * jax.random.normal(k_rm, (dim_out,), dtype=jnp.float32),
        "run_var": jax.random.uniform(k_rv, (dim_out,), minval=0.5, maxval=1.5,
                                      dtype=jnp.float32),
        "eps": 1e-5,
    }

    fwd = jax.jit(functools.partial(upsample_forward, n_stk=n_stk,
                                    n_stk_pnt=n_stk_pnt))
    out = jax.block_until_ready(fwd(x, params))

    assert out.shape == (bs, dim_out, 2 * n_pnt), out.shape

    ref = upsample_reference(x, params, n_stk=n_stk, n_stk_pnt=n_stk_pnt)
    np.testing.assert_allclose(np.asarray(out), np.asarray(ref),
                               rtol=1e-4, atol=1e-4)

    print("KERNEL_OK")
</pallas_src>

<mosaic_0001>
module attributes {stable_mosaic.version = 11 : i64} {
  func.func @_upsample_kernel(%arg0: i32, %arg1: i32, %arg2: memref<1x8x256xf32, #tpu.memory_space<vmem>>, %arg3: memref<4x16x8xf32, #tpu.memory_space<vmem>>, %arg4: memref<16x1xf32, #tpu.memory_space<vmem>>, %arg5: memref<1x16x256xf32, #tpu.memory_space<vmem>>) attributes {dimension_semantics = [#tpu.dimension_semantics<parallel>, #tpu.dimension_semantics<parallel>], iteration_bounds = array<i64: 2, 1>, scalar_prefetch = 0 : i64, scratch_operands = 0 : i64, tpu.core_type = #tpu.core_type<tc>, window_params = [{transform_indices = @transform_0, window_bounds = array<i64: 1, 8, 256>}, {pipeline_mode = #tpu.pipeline_mode<synchronous>, transform_indices = @transform_1, window_bounds = array<i64: 4, 16, 8>}, {pipeline_mode = #tpu.pipeline_mode<synchronous>, transform_indices = @transform_2, window_bounds = array<i64: 16, 1>}, {transform_indices = @transform_3, window_bounds = array<i64: 1, 16, 256>}]} {
    %c0 = arith.constant 0 : index
    %c0_0 = arith.constant 0 : index
    %c0_1 = arith.constant 0 : index
    %0 = vector.load %arg2[%c0, %c0_0, %c0_1] : memref<1x8x256xf32, #tpu.memory_space<vmem>>, vector<1x8x256xf32>
    %1 = vector.shape_cast %0 : vector<1x8x256xf32> to vector<8x256xf32>
    %2 = tpu.iota {dimensions = array<i32: 1>} : vector<1x256xi32>
    %c1_i32 = arith.constant 1 : i32
    %3 = vector.broadcast %c1_i32 : i32 to vector<1x256xi32>
    %4 = arith.andi %2, %3 : vector<1x256xi32>
    %c1_i32_2 = arith.constant 1 : i32
    %5 = vector.broadcast %c1_i32_2 : i32 to vector<1x256xi32>
    %6 = arith.shrsi %2, %5 : vector<1x256xi32>
    %c32_i32 = arith.constant 32 : i32
    %c0_i32 = arith.constant 0 : i32
    %7 = arith.cmpi eq, %c32_i32, %c0_i32 : i32
    %c1_i32_3 = arith.constant 1 : i32
    %8 = arith.select %7, %c1_i32_3, %c32_i32 : i32
    %9 = vector.broadcast %8 : i32 to vector<1x256xi32>
    %10 = arith.remsi %6, %9 : vector<1x256xi32>
    %c0_i32_4 = arith.constant 0 : i32
    %11 = vector.broadcast %c0_i32_4 : i32 to vector<1x256xi32>
    %12 = arith.cmpi ne, %10, %11 : vector<1x256xi32>
    %c0_i32_5 = arith.constant 0 : i32
    %13 = vector.broadcast %c0_i32_5 : i32 to vector<1x256xi32>
    %14 = arith.cmpi slt, %10, %13 : vector<1x256xi32>
    %c0_i32_6 = arith.constant 0 : i32
    %15 = arith.cmpi slt, %8, %c0_i32_6 : i32
    %16 = vector.broadcast %15 : i1 to vector<1x256xi1>
    %17 = vector.broadcast %16 : vector<1x256xi1> to vector<1x256xi1>
    %18 = arith.xori %14, %17 : vector<1x256xi1>
    %19 = arith.andi %18, %12 : vector<1x256xi1>
    %20 = vector.broadcast %8 : i32 to vector<1x256xi32>
    %21 = arith.addi %10, %20 : vector<1x256xi32>
    %22 = arith.select %19, %21, %10 : vector<1x256xi1>, vector<1x256xi32>
    %c0_i32_7 = arith.constant 0 : i32
    %23 = vector.broadcast %c0_i32_7 : i32 to vector<1x256xi32>
    %24 = arith.cmpi eq, %4, %23 : vector<1x256xi32>
    %25 = arith.extui %24 : vector<1x256xi1> to vector<1x256xi32>
    %26 = arith.sitofp %25 : vector<1x256xi32> to vector<1x256xf32>
    %c1_i32_8 = arith.constant 1 : i32
    %27 = vector.broadcast %c1_i32_8 : i32 to vector<1x256xi32>
    %28 = arith.cmpi eq, %4, %27 : vector<1x256xi32>
    %29 = arith.extui %28 : vector<1x256xi1> to vector<1x256xi32>
    %30 = arith.sitofp %29 : vector<1x256xi32> to vector<1x256xf32>
    %c0_i32_9 = arith.constant 0 : i32
    %31 = vector.broadcast %c0_i32_9 : i32 to vector<1x256xi32>
    %32 = arith.cmpi eq, %4, %31 : vector<1x256xi32>
    %c0_i32_10 = arith.constant 0 : i32
    %33 = vector.broadcast %c0_i32_10 : i32 to vector<1x256xi32>
    %34 = arith.cmpi ne, %22, %33 : vector<1x256xi32>
    %35 = arith.andi %32, %34 : vector<1x256xi1>
    %36 = arith.extui %35 : vector<1x256xi1> to vector<1x256xi32>
    %37 = arith.sitofp %36 : vector<1x256xi32> to vector<1x256xf32>
    %c1_i32_11 = arith.constant 1 : i32
    %38 = vector.broadcast %c1_i32_11 : i32 to vector<1x256xi32>
    %39 = arith.cmpi eq, %4, %38 : vector<1x256xi32>
    %c31_i32 = arith.constant 31 : i32
    %40 = vector.broadcast %c31_i32 : i32 to vector<1x256xi32>
    %41 = arith.cmpi ne, %22, %40 : vector<1x256xi32>
    %42 = arith.andi %39, %41 : vector<1x256xi1>
    %43 = arith.extui %42 : vector<1x256xi1> to vector<1x256xi32>
    %44 = arith.sitofp %43 : vector<1x256xi32> to vector<1x256xf32>
    %45 = tpu.iota {dimensions = array<i32: 1>} : vector<1x128xi32>
    %c1_i32_12 = arith.constant 1 : i32
    %46 = tpu.dynamic_rotate %45 by %c1_i32_12 dim 1 : vector<1x128xi32>, i32 -> vector<1x128xi32>
    %47 = vector.extract_strided_slice %46 {offsets = [0, 1], sizes = [1, 1], strides = [1, 1]} : vector<1x128xi32> to vector<1x1xi32>
    %c0_i32_13 = arith.constant 0 : i32
    %48 = vector.broadcast %c0_i32_13 : i32 to vector<1x1xi32>
    %49 = arith.cmpi eq, %47, %48 : vector<1x1xi32>
    %c2_i32 = arith.constant 2 : i32
    %50 = tpu.dynamic_rotate %1 by %c2_i32 dim 1 : vector<8x256xf32>, i32 -> vector<8x256xf32>
    %c254_i32 = arith.constant 254 : i32
    %51 = tpu.dynamic_rotate %1 by %c254_i32 dim 1 : vector<8x256xf32>, i32 -> vector<8x256xf32>
    %52 = vector.shape_cast %49 : vector<1x1xi1> to vector<1x1xi1>
    %53 = vector.broadcast %52 : vector<1x1xi1> to vector<8x256xi1>
    %54 = arith.select %53, %50, %51 : vector<8x256xi1>, vector<8x256xf32>
    %c254_i32_14 = arith.constant 254 : i32
    %55 = tpu.dynamic_rotate %1 by %c254_i32_14 dim 1 : vector<8x256xf32>, i32 -> vector<8x256xf32>
    %c2_i32_15 = arith.constant 2 : i32
    %56 = tpu.dynamic_rotate %1 by %c2_i32_15 dim 1 : vector<8x256xf32>, i32 -> vector<8x256xf32>
    %57 = vector.shape_cast %49 : vector<1x1xi1> to vector<1x1xi1>
    %58 = vector.broadcast %57 : vector<1x1xi1> to vector<8x256xi1>
    %59 = arith.select %58, %55, %56 : vector<8x256xi1>, vector<8x256xf32>
    %c1 = arith.constant 1 : index
    %c0_16 = arith.constant 0 : index
    %c0_17 = arith.constant 0 : index
    %60 = vector.load %arg3[%c1, %c0_16, %c0_17] : memref<4x16x8xf32, #tpu.memory_space<vmem>>, vector<1x16x8xf32>
    %61 = vector.shape_cast %60 : vector<1x16x8xf32> to vector<16x8xf32>
    %62 = vector.broadcast %26 : vector<1x256xf32> to vector<8x256xf32>
    %63 = arith.mulf %1, %62 : vector<8x256xf32>
    %cst = arith.constant dense<0.000000e+00> : vector<16x256xf32>
    %64 = tpu.matmul %61, %63, %cst {dimension_numbers = #tpu.dot_dimension_numbers<[1], [0], [0], [1], [0, 0, 1, 1], [], []>} : vector<16x8xf32>, vector<8x256xf32>, vector<16x256xf32> -> vector<16x256xf32>
    %c2 = arith.constant 2 : index
    %c0_18 = arith.constant 0 : index
    %c0_19 = arith.constant 0 : index
    %65 = vector.load %arg3[%c2, %c0_18, %c0_19] : memref<4x16x8xf32, #tpu.memory_space<vmem>>, vector<1x16x8xf32>
    %66 = vector.shape_cast %65 : vector<1x16x8xf32> to vector<16x8xf32>
    %67 = vector.broadcast %30 : vector<1x256xf32> to vector<8x256xf32>
    %68 = arith.mulf %1, %67 : vector<8x256xf32>
    %cst_20 = arith.constant dense<0.000000e+00> : vector<16x256xf32>
    %69 = tpu.matmul %66, %68, %cst_20 {dimension_numbers = #tpu.dot_dimension_numbers<[1], [0], [0], [1], [0, 0, 1, 1], [], []>} : vector<16x8xf32>, vector<8x256xf32>, vector<16x256xf32> -> vector<16x256xf32>
    %70 = arith.addf %64, %69 : vector<16x256xf32>
    %c3 = arith.constant 3 : index
    %c0_21 = arith.constant 0 : index
    %c0_22 = arith.constant 0 : index
    %71 = vector.load %arg3[%c3, %c0_21, %c0_22] : memref<4x16x8xf32, #tpu.memory_space<vmem>>, vector<1x16x8xf32>
    %72 = vector.shape_cast %71 : vector<1x16x8xf32> to vector<16x8xf32>
    %73 = vector.broadcast %37 : vector<1x256xf32> to vector<8x256xf32>
    %74 = arith.mulf %54, %73 : vector<8x256xf32>
    %cst_23 = arith.constant dense<0.000000e+00> : vector<16x256xf32>
    %75 = tpu.matmul %72, %74, %cst_23 {dimension_numbers = #tpu.dot_dimension_numbers<[1], [0], [0], [1], [0, 0, 1, 1], [], []>} : vector<16x8xf32>, vector<8x256xf32>, vector<16x256xf32> -> vector<16x256xf32>
    %76 = arith.addf %70, %75 : vector<16x256xf32>
    %c0_24 = arith.constant 0 : index
    %c0_25 = arith.constant 0 : index
    %c0_26 = arith.constant 0 : index
    %77 = vector.load %arg3[%c0_24, %c0_25, %c0_26] : memref<4x16x8xf32, #tpu.memory_space<vmem>>, vector<1x16x8xf32>
    %78 = vector.shape_cast %77 : vector<1x16x8xf32> to vector<16x8xf32>
    %79 = vector.broadcast %44 : vector<1x256xf32> to vector<8x256xf32>
    %80 = arith.mulf %59, %79 : vector<8x256xf32>
    %cst_27 = arith.constant dense<0.000000e+00> : vector<16x256xf32>
    %81 = tpu.matmul %78, %80, %cst_27 {dimension_numbers = #tpu.dot_dimension_numbers<[1], [0], [0], [1], [0, 0, 1, 1], [], []>} : vector<16x8xf32>, vector<8x256xf32>, vector<16x256xf32> -> vector<16x256xf32>
    %82 = arith.addf %76, %81 : vector<16x256xf32>
    %c0_28 = arith.constant 0 : index
    %c0_29 = arith.constant 0 : index
    %83 = vector.load %arg4[%c0_28, %c0_29] : memref<16x1xf32, #tpu.memory_space<vmem>>, vector<16x1xf32>
    %84 = vector.broadcast %83 : vector<16x1xf32> to vector<16x256xf32>
    %85 = arith.addf %82, %84 : vector<16x256xf32>
    %cst_30 = arith.constant 5.000000e-01 : f32
    %86 = vector.broadcast %cst_30 : f32 to vector<16x256xf32>
    %87 = arith.mulf %86, %85 : vector<16x256xf32>
    %cst_31 = arith.constant 4.471500e-02 : f32
    %88 = vector.broadcast %cst_31 : f32 to vector<16x256xf32>
    %89 = arith.mulf %88, %85 : vector<16x256xf32>
    %90 = arith.mulf %89, %85 : vector<16x256xf32>
    %91 = arith.mulf %90, %85 : vector<16x256xf32>
    %92 = arith.addf %85, %91 : vector<16x256xf32>
    %cst_32 = arith.constant 0.797884583 : f32
    %93 = vector.broadcast %cst_32 : f32 to vector<16x256xf32>
    %94 = arith.mulf %93, %92 : vector<16x256xf32>
    %95 = math.tanh %94 : vector<16x256xf32>
    %cst_33 = arith.constant 1.000000e+00 : f32
    %96 = vector.broadcast %cst_33 : f32 to vector<16x256xf32>
    %97 = arith.addf %96, %95 : vector<16x256xf32>
    %98 = arith.mulf %87, %97 : vector<16x256xf32>
    %c0_34 = arith.constant 0 : index
    %c0_35 = arith.constant 0 : index
    %c0_36 = arith.constant 0 : index
    %99 = vector.load %arg5[%c0_34, %c0_35, %c0_36] : memref<1x16x256xf32, #tpu.memory_space<vmem>>, vector<1x16x256xf32>
    %100 = vector.shape_cast %99 : vector<1x16x256xf32> to vector<16x256xf32>
    %101 = vector.shape_cast %98 : vector<16x256xf32> to vector<1x16x256xf32>
    tpu.vector_store %arg5[%c0_34, %c0_35, %c0_36], %101 {strides = array<i32>} : memref<1x16x256xf32, #tpu.memory_space<vmem>>, vector<1x16x256xf32>,
    return
  }
  func.func @transform_0(%arg0: i32, %arg1: i32) -> (i32, i32, i32) {
    %c0_i32 = arith.constant 0 : i32
    %c0_i32_0 = arith.constant 0 : i32
    return %arg0, %c0_i32, %arg1 : i32, i32, i32
  }
  func.func @transform_1(%arg0: i32, %arg1: i32) -> (i32, i32, i32) {
    %c0_i32 = arith.constant 0 : i32
    %c0_i32_0 = arith.constant 0 : i32
    %c0_i32_1 = arith.constant 0 : i32
    %c0_i32_2 = arith.constant 0 : i32
    return %c0_i32, %c0_i32_0, %c0_i32_1 : i32, i32, i32
  }
  func.func @transform_2(%arg0: i32, %arg1: i32) -> (i32, i32) {
    %c0_i32 = arith.constant 0 : i32
    %c0_i32_0 = arith.constant 0 : i32
    %c0_i32_1 = arith.constant 0 : i32
    return %c0_i32, %c0_i32_0 : i32, i32
  }
  func.func @transform_3(%arg0: i32, %arg1: i32) -> (i32, i32, i32) {
    %c0_i32 = arith.constant 0 : i32
    %c0_i32_0 = arith.constant 0 : i32
    return %arg0, %c0_i32, %arg1 : i32, i32, i32
  }
}

</mosaic_0001>

<llo_original>
// kernel: upsample_forward.1
$region0: #{upsample_forward.1}
  #allocation0 [shape = 'u32[]', space=smem, size = 0x4, offset = 0x4, fixed_abs, tag = 'smem constant byte address 0x4 - core index']
  #allocation1 [shape = 'u32[144,128]{1,0:T(1,128)}', space=vmem, size = 0x12000, scoped, tag = 'internal scratch']
  %s0 = inlined_call_operand.vmem [shape: f32[2,8,256], index: 0, kind: input, shape index: {}]
  %s1 = inlined_call_operand.vmem [shape: f32[4,16,8], index: 1, kind: input, shape index: {}]
  %s2 = inlined_call_operand.vmem [shape: f32[16,1], index: 2, kind: input, shape index: {}]
  %s3 = inlined_call_operand.hbm [shape: f32[2,16,256], index: 3, kind: output, shape index: {}]
  %s4 = sld [smem:[#allocation0]]
  $region45: #{upsample_forward.1} parent=0
    _
  %s6 = ssub.s32 1, %s4
  %s7 = scalar_select 0, %s6, %s4
  $region1: #{upsample_forward.1} parent=0
    #allocation2 [shape = 'u8[32768]{0}', space=vmem, size = 0x8000, scoped, tag = 'output window, operand 0']
    #allocation3 [shape = 's32[2]{0}', space=sflag, size = 0x8, scoped, tag = 'scoped memory for upsample_forward.1']
    %8 = vsyncpa [#allocation3], 0
    %s9 = scalar_lea.sflag [#allocation3], 1
    %10 = vsyncpa %s9, 0
    loop: start=0, step=1, limit=4
    $region2: #{upsample_forward.1} parent=1 // loop_pre_header
      _
    $region3: #{upsample_forward.1} parent=1 // loop_header
      %s12 = sphi 0, %s16
      %p13 = scmp.ge.s32.totalorder %s12, 4
      %s19 = sphi 0, %s31
      %s20 = sphi 0, %s27
      %s21 = sphi 0, %s19
      %s22 = sphi 0, %s20
      %s23 = sphi 0, %s21
      %s24 = sphi 0, %s22
      %s36 = sphi 0, %s38
      %s39 = sphi 0, %s36
      %s40 = sphi 0, %s39
      %s56 = sphi 0, %s40
      %s60 = sphi 0, %s60
      %s62 = sphi 0, %s60
      %s63 = sphi 0, %s62
      %s77 = sphi 0, %s63
      %s81 = sphi 0, %s81
      %s83 = sphi 0, %s81
      %s84 = sphi 0, %s83
      %s98 = sphi 0, %s84
      %s106 = sphi 0, %s108
      %s109 = sphi 0, %s106
      %s110 = sphi 0, %s109
      %s126 = sphi 0, %s110
    $region4: #{upsample_forward.1} parent=1 // loop_header_branch
      %15 = sbr.rel (%p13) target = $region8
    $region5: #{upsample_forward.1} parent=1 // loop_body
      %s17 = ssub.s32 %s12, 1
      %s18 = ssub.s32 %s12, 2
      %s25 = sadd.s32 1, %s20
      %p26 = scmp.ge.s32.totalorder %s25, 1
      %s27 = scalar_select %p26, 0, %s25
      %s28 = sadd.s32 1, %s19
      %s29 = scalar_select %p26, %s28, %s19
      %p30 = scmp.ge.s32.totalorder %s29, 2
      %s31 = scalar_select %p30, 0, %s29
      %s32 = ssub.s32 %s19, %s31
      %s33 = ssub.s32 %s20, %s27
      %s34 = sor.u32 %s32, %s33
      %p35 = scmp.eq.s32.totalorder %s34, 0
      %s37 = sadd.s32 %s36, 1
      %s38 = scalar_select %p35, %s36, %s37
      %p41 = pneg %p35
      %p42 = scmp.eq.s32.totalorder %s12, 1
      %p43 = por %p41, %p42
      %p44 = scmp.ne.s32.totalorder %s36, %s39
      %p45 = scmp.eq.s32.totalorder %s12, 0
      %p46 = por %p44, %p45
      %p47 = scmp.ne.s32.totalorder %s36, %s39
      %p48 = scmp.eq.s32.totalorder %s17, 1
      %p49 = por %p47, %p48
      %p50 = scmp.ne.s32.totalorder %s39, %s40
      %p51 = scmp.eq.s32.totalorder %s17, 0
      %p52 = por %p50, %p51
      %p53 = scmp.ne.s32.totalorder %s39, %s40
      %p54 = scmp.eq.s32.totalorder %s18, 1
      %p55 = por %p53, %p54
      %p57 = scmp.ne.s32.totalorder %s40, %s56
      %p58 = scmp.eq.s32.totalorder %s18, 0
      %p59 = por %p57, %p58
      %s61 = sadd.s32 %s60, 1
      %p64 = scmp.eq.s32.totalorder %s12, 1
      %p65 = scmp.ne.s32.totalorder %s60, %s62
      %p66 = scmp.eq.s32.totalorder %s12, 0
      %p67 = por %p65, %p66
      %p68 = scmp.ne.s32.totalorder %s60, %s62
      %p69 = scmp.eq.s32.totalorder %s17, 1
      %p70 = por %p68, %p69
      %p71 = scmp.ne.s32.totalorder %s62, %s63
      %p72 = scmp.eq.s32.totalorder %s17, 0
      %p73 = por %p71, %p72
      %p74 = scmp.ne.s32.totalorder %s62, %s63
      %p75 = scmp.eq.s32.totalorder %s18, 1
      %p76 = por %p74, %p75
      %p78 = scmp.ne.s32.totalorder %s63, %s77
      %p79 = scmp.eq.s32.totalorder %s18, 0
      %p80 = por %p78, %p79
      %s82 = sadd.s32 %s81, 1
      %p85 = scmp.eq.s32.totalorder %s12, 1
      %p86 = scmp.ne.s32.totalorder %s81, %s83
      %p87 = scmp.eq.s32.totalorder %s12, 0
      %p88 = por %p86, %p87
      %p89 = scmp.ne.s32.totalorder %s81, %s83
      %p90 = scmp.eq.s32.totalorder %s17, 1
      %p91 = por %p89, %p90
      %p92 = scmp.ne.s32.totalorder %s83, %s84
      %p93 = scmp.eq.s32.totalorder %s17, 0
      %p94 = por %p92, %p93
      %p95 = scmp.ne.s32.totalorder %s83, %s84
      %p96 = scmp.eq.s32.totalorder %s18, 1
      %p97 = por %p95, %p96
      %p99 = scmp.ne.s32.totalorder %s84, %s98
      %p100 = scmp.eq.s32.totalorder %s18, 0
      %p101 = por %p99, %p100
      %s102 = ssub.s32 %s19, %s31
      %s103 = ssub.s32 %s20, %s27
      %s104 = sor.u32 %s102, %s103
      %p105 = scmp.eq.s32.totalorder %s104, 0
      %s107 = sadd.s32 %s106, 1
      %s108 = scalar_select %p105, %s106, %s107
      %p111 = pneg %p105
      %p112 = scmp.eq.s32.totalorder %s12, 1
      %p113 = por %p111, %p112
      %p114 = scmp.ne.s32.totalorder %s106, %s109
      %p115 = scmp.eq.s32.totalorder %s12, 0
      %p116 = por %p114, %p115
      %p117 = scmp.ne.s32.totalorder %s106, %s109
      %p118 = scmp.eq.s32.totalorder %s17, 1
      %p119 = por %p117, %p118
      %p120 = scmp.ne.s32.totalorder %s109, %s110
      %p121 = scmp.eq.s32.totalorder %s17, 0
      %p122 = por %p120, %p121
      %p123 = scmp.ne.s32.totalorder %s109, %s110
      %p124 = scmp.eq.s32.totalorder %s18, 1
      %p125 = por %p123, %p124
      %p127 = scmp.ne.s32.totalorder %s110, %s126
      %p128 = scmp.eq.s32.totalorder %s18, 0
      %p129 = por %p127, %p128
      %p130 = scmp.le.s32.totalorder 1, %s12
      %p131 = scmp.lt.s32.totalorder %s12, 3
      %p132 = pnand %p130, %p131
      %p133 = pneg %p132
      // Predicated region
      $region9: #{upsample_forward.1} parent=5 // pred_check
        _
      $region10: #{upsample_forward.1} parent=5 // pred_check_branch
        %135 = sbr.rel (%p132) target = $region12
      $region11: #{upsample_forward.1} parent=5 // pred_region
        %s136 = ssub.s32 %s12, 1
        // Predicated region
        $region13: #{upsample_forward.1} parent=11 // pred_check
          %p137 = pneg %p73
        $region14: #{upsample_forward.1} parent=11 // pred_check_branch
          %139 = sbr.rel (%p137) target = $region16
        $region15: #{upsample_forward.1} parent=11 // pred_region
          _
        $region16: #{upsample_forward.1} parent=11 // pred_fallthru
          _
        // Predicated region
        $region17: #{upsample_forward.1} parent=11 // pred_check
          %p140 = pneg %p94
        $region18: #{upsample_forward.1} parent=11 // pred_check_branch
          %142 = sbr.rel (%p140) target = $region20
        $region19: #{upsample_forward.1} parent=11 // pred_region
          _
        $region20: #{upsample_forward.1} parent=11 // pred_fallthru
          _
      $region12: #{upsample_forward.1} parent=5 // pred_fallthru
        _
      %p143 = scmp.lt.s32.totalorder %s12, 2
      // Predicated region
      $region21: #{upsample_forward.1} parent=5 // pred_check
        %p144 = pneg %p143
      $region22: #{upsample_forward.1} parent=5 // pred_check_branch
        %146 = sbr.rel (%p144) target = $region24
      $region23: #{upsample_forward.1} parent=5 // pred_region
        // Predicated region
        $region25: #{upsample_forward.1} parent=23 // pred_check
          %p147 = pneg %p46
        $region26: #{upsample_forward.1} parent=23 // pred_check_branch
          %149 = sbr.rel (%p147) target = $region28
        $region27: #{upsample_forward.1} parent=23 // pred_region
          %s150 = smul.u32 2, %s20
          %p151 = scmp.lt.s32.totalorder %s19, 1
          %s152 = scalar_select %p151, %s19, 1
          %p153 = scmp.lt.s32.totalorder %s150, 1
          %s154 = scalar_select %p153, %s150, 1
          %s155 = smul.addr %s152, 2
          %s156 = sadd.s32 %s154, %s155
          %s157 = smul.addr %s156, 8
          %s158 = scalar_lea.vmem %s0, %s157
          %s159 = smul.u32 2, %s20
        $region28: #{upsample_forward.1} parent=23 // pred_fallthru
          _
      $region24: #{upsample_forward.1} parent=5 // pred_fallthru
        _
      %p160 = scmp.le.s32.totalorder 1, %s12
      %p161 = scmp.lt.s32.totalorder %s12, 3
      %p162 = pnand %p160, %p161
      %p163 = pneg %p162
      // Predicated region
      $region29: #{upsample_forward.1} parent=5 // pred_check
        _
      $region30: #{upsample_forward.1} parent=5 // pred_check_branch
        %165 = sbr.rel (%p162) target = $region32
      $region31: #{upsample_forward.1} parent=5 // pred_region
        %s166 = ssub.s32 %s12, 1
        %s167 = smul.u32 2, %s22
        %p168 = scmp.lt.s32.totalorder %s21, 1
        %s169 = scalar_select %p168, %s21, 1
        %p170 = scmp.lt.s32.totalorder %s167, 1
        %s171 = scalar_select %p170, %s167, 1
        %s172 = smul.addr %s169, 2
        %s173 = sadd.s32 %s171, %s172
        %s174 = smul.addr %s173, 8
        %s175 = scalar_lea.vmem %s0, %s174
        %p176 = pneg %p52
        %p177 = pneg %p49
        %p178 = pneg %p73
        %p179 = pneg %p70
        %p180 = pneg %p94
        %p181 = pneg %p91
        %p182 = pneg %p122
        %p183 = pneg %p119
        %s184 = sand.u32 %s109, 1
        %s185 = scalar_lea.sflag [#allocation3], %s184
        %s186 = sand.u32 %s109, 1
        %s187 = smul.addr %s186, 32
        %s188 = scalar_lea.vmem [#allocation2], %s187
        %s189 = smul.u32 2, %s22
        %p190 = scmp.lt.s32.totalorder %s21, 1
        %s191 = scalar_select %p190, %s21, 1
        %p192 = scmp.lt.s32.totalorder %s189, 1
        %s193 = scalar_select %p192, %s189, 1
        %s194 = smul.addr %s191, 2
        %s195 = sadd.s32 %s193, %s194
        %s196 = smul.addr %s195, 8
        %s197 = scalar_lea.vmem %s0, %s196
        %s198 = smul.u32 2, %s22
        %s199 = smul.u32 2, %s22
        %v200 = vld [vmem:[%s197] sm:$0xff]
        %v201 = vld [vmem:[%s197 + $0x8] sm:$0xff]
        %v202 = vlaneseq
        %v203 = vand.u32 %v202, 127
        %v204 = vadd.s32 %v203, 128
        %v205 = vand.u32 %v203, 1
        %v206 = vand.u32 %v204, 1
        %v207 = vshra.s32 %v203, 1
        %v208 = vshra.s32 %v204, 1
        %vm209 = vcmp.lt.s32.totalorder %v207, 0
        %v210 = vsub.s32 0, %v207
        %v211 = vsel %vm209, %v210, %v207
        %v212 = vshrl.u32 %v211, 5
        %v213 = vand.u32 %v211, 31
        %v214 = vsub.s32 0, %v213
        %v215 = vsel %vm209, %v214, %v213
        %vm216 = vcmp.lt.s32.totalorder %v208, 0
        %v217 = vsub.s32 0, %v208
        %v218 = vsel %vm216, %v217, %v208
        %v219 = vshrl.u32 %v218, 5
        %v220 = vand.u32 %v218, 31
        %v221 = vsub.s32 0, %v220
        %v222 = vsel %vm216, %v221, %v220
        %vm223 = vcmp.ne.s32.totalorder %v215, 0
        %vm224 = vcmp.ne.s32.totalorder %v222, 0
        %vm225 = vcmp.lt.s32.totalorder %v215, 0
        %vm226 = vcmp.lt.s32.totalorder %v222, 0
        %vm227 = vmand %vm225, %vm223
        %vm228 = vmand %vm226, %vm224
        %v229 = vadd.s32 %v215, 32
        %v230 = vadd.s32 %v222, 32
        %v231 = vsel %vm227, %v229, %v215
        %v232 = vsel %vm228, %v230, %v222
        %vm233 = vcmp.eq.s32.totalorder %v205, 0
        %vm234 = vcmp.eq.s32.totalorder %v206, 0
        %v235 = vsel %vm233, 1, 0
        %v236 = vsel %vm234, 1, 0
        %v237 = vcvt.s32.f32 %v235
        %v238 = vcvt.s32.f32 %v236
        %vm239 = vcmp.eq.s32.totalorder %v205, 1
        %vm240 = vcmp.eq.s32.totalorder %v206, 1
        %v241 = vsel %vm239, 1, 0
        %v242 = vsel %vm240, 1, 0
        %v243 = vcvt.s32.f32 %v241
        %v244 = vcvt.s32.f32 %v242
        %vm245 = vcmp.ne.s32.totalorder %v231, 0
        %vm246 = vcmp.ne.s32.totalorder %v232, 0
        %vm247 = vmand %vm233, %vm245
        %vm248 = vmand %vm234, %vm246
        %v249 = vsel %vm247, 1, 0
        %v250 = vsel %vm248, 1, 0
        %v251 = vcvt.s32.f32 %v249
        %v252 = vcvt.s32.f32 %v250
        %vm253 = vcmp.ne.s32.totalorder %v231, 31
        %vm254 = vcmp.ne.s32.totalorder %v232, 31
        %vm255 = vmand %vm239, %vm253
        %vm256 = vmand %vm240, %vm254
        %v257 = vsel %vm255, 1, 0
        %v258 = vsel %vm256, 1, 0
        %v259 = vcvt.s32.f32 %v257
        %v260 = vcvt.s32.f32 %v258
        %261 = vrot.lane.b32.xlu0 %v203, 1
        %v262 = vpop.permute.xlu0 %261
        %vm263 = vcmp.eq.s32.totalorder %v262, 0
        %264 = vrot.lane.b32.xlu0 %v200, 2
        %v265 = vpop.permute.xlu0 %264
        %266 = vrot.lane.b32.xlu0 %v201, 2
        %v267 = vpop.permute.xlu0 %266
        %vm268 = vcmp.lt.s32.totalorder %v203, 2
        %v269 = vsel %vm268, %v265, %v267
        %v270 = vsel %vm268, %v267, %v265
        %271 = vrot.lane.b32.xlu0 %v200, 126
        %v272 = vpop.permute.xlu0 %271
        %273 = vrot.lane.b32.xlu0 %v201, 126
        %v274 = vpop.permute.xlu0 %273
        %vm275 = vcmp.lt.s32.totalorder %v203, 126
        %v276 = vsel %vm275, %v272, %v274
        %v277 = vsel %vm275, %v274, %v272
        %v278 = vsel %vm263, 1, 0
        %279 = vrot.lane.b32.xlu0 %v278, 127
        %v280 = vpop.permute.xlu0 %279
        %s281 = vtos %v280
        %v282 = vstv %s281
        %vm283 = vcmp.eq.s32.totalorder %v282, 1
        %v284 = vsel %vm283, %v270, %v276
        %v285 = vsel %vm283, %v269, %v277
        %v286 = vsel %vm283, %v276, %v270
        %v287 = vsel %vm283, %v277, %v269
        %s288 = scalar_lea.vmem %s1, 16
        %v289 = vld [vmem:[%s288] sm:$0xff]
        %v290 = vld [vmem:[%s288 + $0x8] sm:$0xff]
        %v291 = vmul.f32 %v200, %v237
        %v292 = vmul.f32 %v201, %v238
        %s293 = scalar_lea.vmem %s1, 32
        %v294 = vld [vmem:[%s293] sm:$0xff]
        %v295 = vld [vmem:[%s293 + $0x8] sm:$0xff]
        %v296 = vmul.f32 %v200, %v243
        %v297 = vmul.f32 %v201, %v244
        %vm298 = vcmask 64512
        %v300 = vsel %vm298, %v294, 0
        %v303 = vsel %vm298, %v295, 0
        %305 = vmatprep.subr.mxu0 %v297
        %306 = vmatpush1.msra.mxu0 %v296
        %307 = vmatprep.subr.mxu0 0.0
        %308 = vmatpush1.msra.mxu0 0.0
        %309 = vmatprep.subr.mxu0 0.0
        %310 = vmatpush1.msra.mxu0 0.0
        %311 = vmatprep.subr.mxu0 0.0
        %312 = vmatpush1.msra.mxu0 0.0
        %313 = vmatprep.subr.mxu0 0.0
        %314 = vmatpush1.msra.mxu0 0.0
        %315 = vmatprep.subr.mxu0 0.0
        %316 = vmatpush1.msra.mxu0 0.0
        %317 = vmatprep.subr.mxu0 0.0
        %318 = vmatpush1.msra.mxu0 0.0
        %319 = vmatprep.subr.mxu0 0.0
        %320 = vmatpush1.msra.mxu0 0.0
        %321 = vmatprep.subr.mxu0 0.0
        %322 = vmatpush1.msra.mxu0 0.0
        %323 = vmatprep.subr.mxu0 0.0
        %324 = vmatpush1.msra.mxu0 0.0
        %325 = vmatprep.subr.mxu0 0.0
        %326 = vmatpush1.msra.mxu0 0.0
        %327 = vmatprep.subr.mxu0 0.0
        %328 = vmatpush1.msra.mxu0 0.0
        %329 = vmatprep.subr.mxu0 0.0
        %330 = vmatpush1.msra.mxu0 0.0
        %331 = vmatprep.subr.mxu0 0.0
        %332 = vmatpush1.msra.mxu0 0.0
        %333 = vmatprep.subr.mxu0 0.0
        %334 = vmatpush1.msra.mxu0 0.0
        %335 = vmatprep.subr.mxu0 0.0
        %336 = vmatpush1.msra.mxu0 0.0
        %337 = vmatprep.subr.mxu0 0.0
        %338 = vmatpush1.msra.mxu0 0.0
        %339 = vmatprep.subr.mxu0 0.0
        %340 = vmatpush1.msra.mxu0 0.0
        %341 = vmatprep.subr.mxu0 0.0
        %342 = vmatpush1.msra.mxu0 0.0
        %343 = vmatprep.subr.mxu0 0.0
        %344 = vmatpush1.msra.mxu0 0.0
        %345 = vmatprep.subr.mxu0 0.0
        %346 = vmatpush1.msra.mxu0 0.0
        %347 = vmatprep.subr.mxu0 0.0
        %348 = vmatpush1.msra.mxu0 0.0
        %349 = vmatprep.subr.mxu0 0.0
        %350 = vmatpush1.msra.mxu0 0.0
        %351 = vmatprep.subr.mxu0 0.0
        %352 = vmatpush1.msra.mxu0 0.0
        %353 = vmatprep.subr.mxu0 0.0
        %354 = vmatpush1.msra.mxu0 0.0
        %355 = vmatprep.subr.mxu0 0.0
        %356 = vmatpush1.msra.mxu0 0.0
        %357 = vmatprep.subr.mxu0 0.0
        %358 = vmatpush1.msra.mxu0 0.0
        %359 = vmatprep.subr.mxu0 0.0
        %360 = vmatpush1.msra.mxu0 0.0
        %361 = vmatprep.subr.mxu0 0.0
        %362 = vmatpush1.msra.mxu0 0.0
        %363 = vmatprep.subr.mxu0 0.0
        %364 = vmatpush1.msra.mxu0 0.0
        %365 = vmatprep.subr.mxu0 0.0
        %366 = vmatpush1.msra.mxu0 0.0
        %367 = vmatprep.subr.mxu0 0.0
        %368 = vmatpush1.msra.mxu0 0.0
        %369 = vmatprep.mubr.f32.mxu0 0.0
        %370 = vmatmul.mubr.f32.gmra.mrb[0].mxu0 %v300
        %v371 = vpop.f32.mrb[0].mxu0
        %v372 = vadd.f32 0.0, %v371
        %v373 = vpop.f32.mrb[0].mxu0
        %v374 = vadd.f32 0.0, %v373
        %375 = vmatprep.mubr.f32.mxu0 0.0
        %376 = vmatmul.mubr.f32.gmra.mrb[0].mxu0 %v303
        %v377 = vpop.f32.mrb[0].mxu0
        %v378 = vadd.f32 0.0, %v377
        %v379 = vpop.f32.mrb[0].mxu0
        %v380 = vadd.f32 0.0, %v379
        %381 = vdwg.mxu0
        %v383 = vsel %vm298, %v289, 0
        %v386 = vsel %vm298, %v290, 0
        %388 = vmatprep.subr.mxu0 %v292
        %389 = vmatpush1.msra.mxu0 %v291
        %390 = vmatprep.subr.mxu0 0.0
        %391 = vmatpush1.msra.mxu0 0.0
        %392 = vmatprep.subr.mxu0 0.0
        %393 = vmatpush1.msra.mxu0 0.0
        %394 = vmatprep.subr.mxu0 0.0
        %395 = vmatpush1.msra.mxu0 0.0
        %396 = vmatprep.subr.mxu0 0.0
        %397 = vmatpush1.msra.mxu0 0.0
        %398 = vmatprep.subr.mxu0 0.0
        %399 = vmatpush1.msra.mxu0 0.0
        %400 = vmatprep.subr.mxu0 0.0
        %401 = vmatpush1.msra.mxu0 0.0
        %402 = vmatprep.subr.mxu0 0.0
        %403 = vmatpush1.msra.mxu0 0.0
        %404 = vmatprep.subr.mxu0 0.0
        %405 = vmatpush1.msra.mxu0 0.0
        %406 = vmatprep.subr.mxu0 0.0
        %407 = vmatpush1.msra.mxu0 0.0
        %408 = vmatprep.subr.mxu0 0.0
        %409 = vmatpush1.msra.mxu0 0.0
        %410 = vmatprep.subr.mxu0 0.0
        %411 = vmatpush1.msra.mxu0 0.0
        %412 = vmatprep.subr.mxu0 0.0
        %413 = vmatpush1.msra.mxu0 0.0
        %414 = vmatprep.subr.mxu0 0.0
        %415 = vmatpush1.msra.mxu0 0.0
        %416 = vmatprep.subr.mxu0 0.0
        %417 = vmatpush1.msra.mxu0 0.0
        %418 = vmatprep.subr.mxu0 0.0
        %419 = vmatpush1.msra.mxu0 0.0
        %420 = vmatprep.subr.mxu0 0.0
        %421 = vmatpush1.msra.mxu0 0.0
        %422 = vmatprep.subr.mxu0 0.0
        %423 = vmatpush1.msra.mxu0 0.0
        %424 = vmatprep.subr.mxu0 0.0
        %425 = vmatpush1.msra.mxu0 0.0
        %426 = vmatprep.subr.mxu0 0.0
        %427 = vmatpush1.msra.mxu0 0.0
        %428 = vmatprep.subr.mxu0 0.0
        %429 = vmatpush1.msra.mxu0 0.0
        %430 = vmatprep.subr.mxu0 0.0
        %431 = vmatpush1.msra.mxu0 0.0
        %432 = vmatprep.subr.mxu0 0.0
        %433 = vmatpush1.msra.mxu0 0.0
        %434 = vmatprep.subr.mxu0 0.0
        %435 = vmatpush1.msra.mxu0 0.0
        %436 = vmatprep.subr.mxu0 0.0
        %437 = vmatpush1.msra.mxu0 0.0
        %438 = vmatprep.subr.mxu0 0.0
        %439 = vmatpush1.msra.mxu0 0.0
        %440 = vmatprep.subr.mxu0 0.0
        %441 = vmatpush1.msra.mxu0 0.0
        %442 = vmatprep.subr.mxu0 0.0
        %443 = vmatpush1.msra.mxu0 0.0
        %444 = vmatprep.subr.mxu0 0.0
        %445 = vmatpush1.msra.mxu0 0.0
        %446 = vmatprep.subr.mxu0 0.0
        %447 = vmatpush1.msra.mxu0 0.0
        %448 = vmatprep.subr.mxu0 0.0
        %449 = vmatpush1.msra.mxu0 0.0
        %450 = vmatprep.subr.mxu0 0.0
        %451 = vmatpush1.msra.mxu0 0.0
        %452 = vmatprep.mubr.f32.mxu0 0.0
        %453 = vmatmul.mubr.f32.gmra.mrb[0].mxu0 %v383
        %v454 = vpop.f32.mrb[0].mxu0
        %v455 = vadd.f32 %v372, %v454
        %v456 = vpop.f32.mrb[0].mxu0
        %v457 = vadd.f32 %v374, %v456
        %458 = vmatprep.mubr.f32.mxu0 0.0
        %459 = vmatmul.mubr.f32.gmra.mrb[0].mxu0 %v386
        %v460 = vpop.f32.mrb[0].mxu0
        %v461 = vadd.f32 %v378, %v460
        %v462 = vpop.f32.mrb[0].mxu0
        %v463 = vadd.f32 %v380, %v462
        %464 = vdwg.mxu0
        %s465 = scalar_lea.vmem %s1, 48
        %v466 = vld [vmem:[%s465] sm:$0xff]
        %v467 = vld [vmem:[%s465 + $0x8] sm:$0xff]
        %v468 = vmul.f32 %v284, %v251
        %v469 = vmul.f32 %v285, %v252
        %v471 = vsel %vm298, %v466, 0
        %v474 = vsel %vm298, %v467, 0
        %476 = vmatprep.subr.mxu0 %v469
        %477 = vmatpush1.msra.mxu0 %v468
        %478 = vmatprep.subr.mxu0 0.0
        %479 = vmatpush1.msra.mxu0 0.0
        %480 = vmatprep.subr.mxu0 0.0
        %481 = vmatpush1.msra.mxu0 0.0
        %482 = vmatprep.subr.mxu0 0.0
        %483 = vmatpush1.msra.mxu0 0.0
        %484 = vmatprep.subr.mxu0 0.0
        %485 = vmatpush1.msra.mxu0 0.0
        %486 = vmatprep.subr.mxu0 0.0
        %487 = vmatpush1.msra.mxu0 0.0
        %488 = vmatprep.subr.mxu0 0.0
        %489 = vmatpush1.msra.mxu0 0.0
        %490 = vmatprep.subr.mxu0 0.0
        %491 = vmatpush1.msra.mxu0 0.0
        %492 = vmatprep.subr.mxu0 0.0
        %493 = vmatpush1.msra.mxu0 0.0
        %494 = vmatprep.subr.mxu0 0.0
        %495 = vmatpush1.msra.mxu0 0.0
        %496 = vmatprep.subr.mxu0 0.0
        %497 = vmatpush1.msra.mxu0 0.0
        %498 = vmatprep.subr.mxu0 0.0
        %499 = vmatpush1.msra.mxu0 0.0
        %500 = vmatprep.subr.mxu0 0.0
        %501 = vmatpush1.msra.mxu0 0.0
        %502 = vmatprep.subr.mxu0 0.0
        %503 = vmatpush1.msra.mxu0 0.0
        %504 = vmatprep.subr.mxu0 0.0
        %505 = vmatpush1.msra.mxu0 0.0
        %506 = vmatprep.subr.mxu0 0.0
        %507 = vmatpush1.msra.mxu0 0.0
        %508 = vmatprep.subr.mxu0 0.0
        %509 = vmatpush1.msra.mxu0 0.0
        %510 = vmatprep.subr.mxu0 0.0
        %511 = vmatpush1.msra.mxu0 0.0
        %512 = vmatprep.subr.mxu0 0.0
        %513 = vmatpush1.msra.mxu0 0.0
        %514 = vmatprep.subr.mxu0 0.0
        %515 = vmatpush1.msra.mxu0 0.0
        %516 = vmatprep.subr.mxu0 0.0
        %517 = vmatpush1.msra.mxu0 0.0
        %518 = vmatprep.subr.mxu0 0.0
        %519 = vmatpush1.msra.mxu0 0.0
        %520 = vmatprep.subr.mxu0 0.0
        %521 = vmatpush1.msra.mxu0 0.0
        %522 = vmatprep.subr.mxu0 0.0
        %523 = vmatpush1.msra.mxu0 0.0
        %524 = vmatprep.subr.mxu0 0.0
        %525 = vmatpush1.msra.mxu0 0.0
        %526 = vmatprep.subr.mxu0 0.0
        %527 = vmatpush1.msra.mxu0 0.0
        %528 = vmatprep.subr.mxu0 0.0
        %529 = vmatpush1.msra.mxu0 0.0
        %530 = vmatprep.subr.mxu0 0.0
        %531 = vmatpush1.msra.mxu0 0.0
        %532 = vmatprep.subr.mxu0 0.0
        %533 = vmatpush1.msra.mxu0 0.0
        %534 = vmatprep.subr.mxu0 0.0
        %535 = vmatpush1.msra.mxu0 0.0
        %536 = vmatprep.subr.mxu0 0.0
        %537 = vmatpush1.msra.mxu0 0.0
        %538 = vmatprep.subr.mxu0 0.0
        %539 = vmatpush1.msra.mxu0 0.0
        %540 = vmatprep.mubr.f32.mxu0 0.0
        %541 = vmatmul.mubr.f32.gmra.mrb[0].mxu0 %v471
        %v542 = vpop.f32.mrb[0].mxu0
        %v543 = vadd.f32 0.0, %v542
        %v544 = vpop.f32.mrb[0].mxu0
        %v545 = vadd.f32 0.0, %v544
        %546 = vmatprep.mubr.f32.mxu0 0.0
        %547 = vmatmul.mubr.f32.gmra.mrb[0].mxu0 %v474
        %v548 = vpop.f32.mrb[0].mxu0
        %v549 = vadd.f32 0.0, %v548
        %v550 = vpop.f32.mrb[0].mxu0
        %v551 = vadd.f32 0.0, %v550
        %552 = vdwg.mxu0
        %v553 = vadd.f32 %v455, %v543
        %v554 = vadd.f32 %v457, %v545
        %v555 = vadd.f32 %v461, %v549
        %v556 = vadd.f32 %v463, %v551
        %v557 = vld [vmem:[%s1] sm:$0xff]
        %v558 = vld [vmem:[%s1 + $0x8] sm:$0xff]
        %v559 = vmul.f32 %v286, %v259
        %v560 = vmul.f32 %v287, %v260
        %v562 = vsel %vm298, %v557, 0
        %v565 = vsel %vm298, %v558, 0
        %567 = vmatprep.subr.mxu0 %v560
        %568 = vmatpush1.msra.mxu0 %v559
        %569 = vmatprep.subr.mxu0 0.0
        %570 = vmatpush1.msra.mxu0 0.0
        %571 = vmatprep.subr.mxu0 0.0
        %572 = vmatpush1.msra.mxu0 0.0
        %573 = vmatprep.subr.mxu0 0.0
        %574 = vmatpush1.msra.mxu0 0.0
        %575 = vmatprep.subr.mxu0 0.0
        %576 = vmatpush1.msra.mxu0 0.0
        %577 = vmatprep.subr.mxu0 0.0
        %578 = vmatpush1.msra.mxu0 0.0
        %579 = vmatprep.subr.mxu0 0.0
        %580 = vmatpush1.msra.mxu0 0.0
        %581 = vmatprep.subr.mxu0 0.0
        %582 = vmatpush1.msra.mxu0 0.0
        %583 = vmatprep.subr.mxu0 0.0
        %584 = vmatpush1.msra.mxu0 0.0
        %585 = vmatprep.subr.mxu0 0.0
        %586 = vmatpush1.msra.mxu0 0.0
        %587 = vmatprep.subr.mxu0 0.0
        %588 = vmatpush1.msra.mxu0 0.0
        %589 = vmatprep.subr.mxu0 0.0
        %590 = vmatpush1.msra.mxu0 0.0
        %591 = vmatprep.subr.mxu0 0.0
        %592 = vmatpush1.msra.mxu0 0.0
        %593 = vmatprep.subr.mxu0 0.0
        %594 = vmatpush1.msra.mxu0 0.0
        %595 = vmatprep.subr.mxu0 0.0
        %596 = vmatpush1.msra.mxu0 0.0
        %597 = vmatprep.subr.mxu0 0.0
        %598 = vmatpush1.msra.mxu0 0.0
        %599 = vmatprep.subr.mxu0 0.0
        %600 = vmatpush1.msra.mxu0 0.0
        %601 = vmatprep.subr.mxu0 0.0
        %602 = vmatpush1.msra.mxu0 0.0
        %603 = vmatprep.subr.mxu0 0.0
        %604 = vmatpush1.msra.mxu0 0.0
        %605 = vmatprep.subr.mxu0 0.0
        %606 = vmatpush1.msra.mxu0 0.0
        %607 = vmatprep.subr.mxu0 0.0
        %608 = vmatpush1.msra.mxu0 0.0
        %609 = vmatprep.subr.mxu0 0.0
        %610 = vmatpush1.msra.mxu0 0.0
        %611 = vmatprep.subr.mxu0 0.0
        %612 = vmatpush1.msra.mxu0 0.0
        %613 = vmatprep.subr.mxu0 0.0
        %614 = vmatpush1.msra.mxu0 0.0
        %615 = vmatprep.subr.mxu0 0.0
        %616 = vmatpush1.msra.mxu0 0.0
        %617 = vmatprep.subr.mxu0 0.0
        %618 = vmatpush1.msra.mxu0 0.0
        %619 = vmatprep.subr.mxu0 0.0
        %620 = vmatpush1.msra.mxu0 0.0
        %621 = vmatprep.subr.mxu0 0.0
        %622 = vmatpush1.msra.mxu0 0.0
        %623 = vmatprep.subr.mxu0 0.0
        %624 = vmatpush1.msra.mxu0 0.0
        %625 = vmatprep.subr.mxu0 0.0
        %626 = vmatpush1.msra.mxu0 0.0
        %627 = vmatprep.subr.mxu0 0.0
        %628 = vmatpush1.msra.mxu0 0.0
        %629 = vmatprep.subr.mxu0 0.0
        %630 = vmatpush1.msra.mxu0 0.0
        %631 = vmatprep.mubr.f32.mxu0 0.0
        %632 = vmatmul.mubr.f32.gmra.mrb[0].mxu0 %v562
        %v633 = vpop.f32.mrb[0].mxu0
        %v634 = vadd.f32 0.0, %v633
        %v635 = vpop.f32.mrb[0].mxu0
        %v636 = vadd.f32 0.0, %v635
        %637 = vmatprep.mubr.f32.mxu0 0.0
        %638 = vmatmul.mubr.f32.gmra.mrb[0].mxu0 %v565
        %v639 = vpop.f32.mrb[0].mxu0
        %v640 = vadd.f32 0.0, %v639
        %v641 = vpop.f32.mrb[0].mxu0
        %v642 = vadd.f32 0.0, %v641
        %643 = vdwg.mxu0
        %v644 = vadd.f32 %v553, %v634
        %v645 = vadd.f32 %v554, %v636
        %v646 = vadd.f32 %v555, %v640
        %v647 = vadd.f32 %v556, %v642
        %v648 = vld [vmem:[%s2] sm:$0xff]
        %v649 = vld [vmem:[%s2 + $0x8] sm:$0xff]
        %651 = vset.pattern.permute.xlu0 0
        %652 = vperm.xlu0 %651, %v648
        %v653 = vpop.permute.xlu0 %652
        %656 = vset.pattern.permute.xlu0 0
        %657 = vperm.xlu0 %656, %v649
        %v658 = vpop.permute.xlu0 %657
        %v660 = vadd.f32 %v644, %v653
        %v661 = vadd.f32 %v645, %v653
        %v662 = vadd.f32 %v646, %v658
        %v663 = vadd.f32 %v647, %v658
        %v664 = vmul.f32 %v660, 0.5
        %v665 = vmul.f32 %v661, 0.5
        %v666 = vmul.f32 %v662, 0.5
        %v667 = vmul.f32 %v663, 0.5
        %v668 = vmul.f32 %v660, 0.044715
        %v669 = vmul.f32 %v661, 0.044715
        %v670 = vmul.f32 %v662, 0.044715
        %v671 = vmul.f32 %v663, 0.044715
        %v672 = vmul.f32 %v668, %v660
        %v673 = vmul.f32 %v669, %v661
        %v674 = vmul.f32 %v670, %v662
        %v675 = vmul.f32 %v671, %v663
        %v676 = vmul.f32 %v672, %v660
        %v677 = vmul.f32 %v673, %v661
        %v678 = vmul.f32 %v674, %v662
        %v679 = vmul.f32 %v675, %v663
        %v680 = vadd.f32 %v660, %v676
        %v681 = vadd.f32 %v661, %v677
        %v682 = vadd.f32 %v662, %v678
        %v683 = vadd.f32 %v663, %v679
        %v684 = vmul.f32 %v680, 0.7978846
        %v685 = vmul.f32 %v681, 0.7978846
        %v686 = vmul.f32 %v682, 0.7978846
        %v687 = vmul.f32 %v683, 0.7978846
        %v688 = vtanh.pop %v684
        %v689 = vtanh.pop %v685
        %v690 = vtanh.pop %v686
        %v691 = vtanh.pop %v687
        %v692 = vadd.f32 %v688, 1.0
        %v693 = vadd.f32 %v689, 1.0
        %v694 = vadd.f32 %v690, 1.0
        %v695 = vadd.f32 %v691, 1.0
        %v696 = vmul.f32 %v664, %v692
        %v697 = vmul.f32 %v665, %v693
        %v698 = vmul.f32 %v666, %v694
        %v699 = vmul.f32 %v667, %v695
        %700 = vst [vmem:[%s188] sm:$0xff] %v696
        %701 = vst [vmem:[%s188 + $0x8] sm:$0xff] %v697
        %702 = vst [vmem:[%s188 + $0x10] sm:$0xff] %v698
        %703 = vst [vmem:[%s188 + $0x18] sm:$0xff] %v699
        %s704 = sand.u32 %s109, 1
        %s705 = scalar_lea.sflag [#allocation3], %s704
        %s706 = sand.u32 %s109, 1
        %s707 = smul.addr %s706, 32
        %s708 = scalar_lea.vmem [#allocation2], %s707
        // Predicated region
        $region33: #{upsample_forward.1} parent=31 // pred_check
          %p709 = pneg %p119
        $region34: #{upsample_forward.1} parent=31 // pred_check_branch
          %711 = sbr.rel (%p709) target = $region36
        $region35: #{upsample_forward.1} parent=31 // pred_region
          %s712 = smul.u32 2, %s22
          %s714 = ssub.s32 512, 512
          %715 = vsyncadd %s705, %s714
          %s716 = smul.addr %s21, 4
          %s717 = sadd.s32 %s712, %s716
          %s718 = smul.addr %s717, 128
          %s719 = scalar_lea.hbm %s3, %s718
          %s720 = sshll.u32 %s708, 4
          %s721 = int_to_ptr.vmem [resolvable:$true] %s720
          %726 = dma.vmem_to_hbm [thread:$0]  %s721, 512, %s719, %s705, 256, 256, 16
        $region36: #{upsample_forward.1} parent=31 // pred_fallthru
          _
      $region32: #{upsample_forward.1} parent=5 // pred_fallthru
        _
      %p727 = scmp.le.s32.totalorder 2, %s12
      // Predicated region
      $region37: #{upsample_forward.1} parent=5 // pred_check
        %p728 = pneg %p727
      $region38: #{upsample_forward.1} parent=5 // pred_check_branch
        %730 = sbr.rel (%p728) target = $region40
      $region39: #{upsample_forward.1} parent=5 // pred_region
        %s731 = ssub.s32 %s12, 2
        // Predicated region
        $region41: #{upsample_forward.1} parent=39 // pred_check
          %p732 = pneg %p125
        $region42: #{upsample_forward.1} parent=39 // pred_check_branch
          %734 = sbr.rel (%p732) target = $region44
        $region43: #{upsample_forward.1} parent=39 // pred_region
          %s735 = sand.u32 %s110, 1
          %s736 = scalar_lea.sflag [#allocation3], %s735
          %s737 = sand.u32 %s110, 1
          %s738 = smul.addr %s737, 32
          %s739 = scalar_lea.vmem [#allocation2], %s738
          %740 = dma.done %s736, 512
        $region44: #{upsample_forward.1} parent=39 // pred_fallthru
          _
      $region40: #{upsample_forward.1} parent=5 // pred_fallthru
        _
    $region6: #{upsample_forward.1} parent=1 // loop_footer
      %s16 = sadd.s32 1, %s12
    $region7: #{upsample_forward.1} parent=1 // loop_footer_branch
      %11 = sbr.rel target = $region3
    $region8: #{upsample_forward.1} parent=1 // loop_exit
      _
    %741 = vsyncpa [#allocation3], 1
    %s742 = scalar_lea.sflag [#allocation3], 1
    %743 = vsyncpa %s742, 1

</llo_original>
